<compile_context>
chip_gen: v5e
topology: v5e:2x2
jax: 0.10.0
libtpu: 0.0.40
codegen_flags: <defaults>
</compile_context>

<pallas_src>
import numpy as np
import jax
import jax.numpy as jnp
from jax.experimental import pallas as pl
from jax.experimental.pallas import tpu as pltpu


def _round_up(v, m):
    return ((v + m - 1) // m) * m


def length_regulator_kernel(totals_ref, bounds_ref, x_ref, out_ref):
    # totals_ref: (N,)       int32 in SMEM (scalar prefetch) -- frames per batch
    # bounds_ref: (1, 2, Lp) int32  -- row 0: start frame, row 1: end frame
    # x_ref:      (1, Lp, D) compute dtype (bf16 or f32)
    # out_ref:    (1, tT, D) output dtype
    tT = out_ref.shape[1]
    Lp = x_ref.shape[1]

    b = pl.program_id(0)
    t0 = pl.program_id(1) * tT                                  # tile offset (frames)
    active = t0 < totals_ref[b]                                 # any real frame in tile?

    @pl.when(active)
    def _compute():
        # Hoist the tile offset off the big iota: shift the (1, Lp) bounds instead
        # of adding t0 to a full (tT, Lp) int32 iota every grid step.
        starts = bounds_ref[0, 0:1, :] - t0                     # (1, Lp)
        ends = bounds_ref[0, 1:2, :] - t0                       # (1, Lp)
        t_idx = jax.lax.broadcasted_iota(jnp.int32, (tT, Lp), 0)
        align = ((t_idx >= starts) & (t_idx < ends)).astype(x_ref.dtype)  # one-hot rows
        out_ref[0, ...] = jnp.dot(
            align, x_ref[0, ...], preferred_element_type=jnp.float32
        ).astype(out_ref.dtype)

    @pl.when(jnp.logical_not(active))
    def _zero_fill():
        # Entire tile is beyond this batch's expanded length -> pure padding.
        out_ref[...] = jnp.zeros_like(out_ref)


def length_regulate(x, durations, T, *, compute_dtype=None, out_dtype=None,
                    max_time_tile=1024):
    """x: (N, L, D); durations: (N, L) int; T: static output length (frames)."""
    N, L, D = x.shape
    out_dtype = x.dtype if out_dtype is None else out_dtype
    if compute_dtype is None:
        # One-hot alignment => matmul result equals cdt(x) exactly; bf16 runs the
        # MXU at full rate on all gens. Pass jnp.float32 for exact f32 semantics.
        cdt = jnp.bfloat16 if x.dtype == jnp.float32 else x.dtype
    else:
        cdt = compute_dtype

    # Pad L (MXU K axis / mask lane axis) to a multiple of 128; padded phonemes
    # get duration 0 (start == end) so they contribute nothing.
    Lp = _round_up(L, 128)
    durations = durations.astype(jnp.int32)
    if Lp != L:
        durations = jnp.pad(durations, ((0, 0), (0, Lp - L)))
    ends = jnp.cumsum(durations, axis=-1).astype(jnp.int32)      # (N, Lp)
    starts = ends - durations                                    # (N, Lp)
    bounds = jnp.stack([starts, ends], axis=1)                   # (N, 2, Lp)
    totals = ends[:, -1]                                         # (N,) frames per batch

    xp = x.astype(cdt)
    if Lp != L:
        xp = jnp.pad(xp, ((0, 0), (0, Lp - L), (0, 0)))          # (N, Lp, D)

    # Time-tile selection: as large as possible (<= max_time_tile, multiple of 8),
    # shrunk only if the estimated VMEM footprint exceeds a conservative budget.
    cdt_bytes = jnp.dtype(cdt).itemsize
    out_bytes = jnp.dtype(out_dtype).itemsize

    def _vmem_est(t):
        return (2 * t * D * out_bytes            # double-buffered output block
                + 2 * Lp * D * cdt_bytes         # double-buffered resident x block
                + 2 * 2 * Lp * 4                 # bounds
                + t * Lp * (4 + cdt_bytes)       # iota + mask temporaries
                + t * D * 4)                     # f32 matmul result before cast

    budget = 40 * 1024 * 1024
    tT = max(8, min(_round_up(max_time_tile, 8), _round_up(T, 8)))
    while tT > 8 and _vmem_est(tT) > budget:
        tT = _round_up(max(tT // 2, 8), 8)
    n_t = pl.cdiv(T, tT)                         # ragged last tile is masked by Pallas

    vmem_limit = int(min(max(2 * _vmem_est(tT), 32 * 1024 * 1024),
                         48 * 1024 * 1024))      # > v5e/v6e defaults, < v7x physical

    out = pl.pallas_call(
        length_regulator_kernel,
        out_shape=jax.ShapeDtypeStruct((N, T, D), out_dtype),
        grid_spec=pltpu.PrefetchScalarGridSpec(
            num_scalar_prefetch=1,               # per-batch frame totals -> SMEM
            grid=(N, n_t),
            in_specs=[
                # Constant block index across the t axis -> resident, no re-DMA.
                pl.BlockSpec((1, 2, Lp), lambda b, t, tot: (b, 0, 0)),
                pl.BlockSpec((1, Lp, D), lambda b, t, tot: (b, 0, 0)),
            ],
            out_specs=pl.BlockSpec((1, tT, D), lambda b, t, tot: (b, t, 0)),
        ),
        compiler_params=pltpu.CompilerParams(
            dimension_semantics=("parallel", "parallel"),
            vmem_limit_bytes=vmem_limit,
        ),
    )(totals, bounds, xp)
    return out


def length_regulator_forward(x, alpha, duration_target=None, duration=None,
                             mel_max_len=None, compute_dtype=None,
                             out_dtype=None, max_time_tile=1024, t_bucket=256):
    """Mirrors LengthRegulator.forward."""
    if duration_target is not None:
        dt = jnp.asarray(duration_target).astype(jnp.int32)
        if mel_max_len:
            # Static output length: no device->host sync needed for durations.
            # (Matches F.pad: if expand_max_len > mel_max_len the time axis is
            # cropped, exactly like a negative torch.nn.functional.pad.)
            T = int(mel_max_len)
        else:
            # Dynamic T: same host sync the reference does via .item().
            T = max(int(jnp.max(jnp.sum(dt, axis=-1))), 1)
        return length_regulate(x, dt, T, compute_dtype=compute_dtype,
                               out_dtype=out_dtype, max_time_tile=max_time_tile)

    # Inference branch: duration is (N, L, 1) float from the duration predictor.
    d = jnp.asarray(duration)
    # torch .int() truncates toward zero; clamp to >= 0 so the cumsum stays
    # monotone and the alignment rows stay one-hot even for bad predictions.
    d_int = jnp.maximum((d * float(alpha) + 0.5).astype(jnp.int32), 0)
    if d_int.ndim == 3:
        d_int = jnp.squeeze(d_int, -1)                            # (N, L)
    T = max(int(jnp.max(jnp.sum(d_int, axis=-1))), 1)             # host sync (dynamic T)
    # Bucket the dynamic length so repeated inference calls hit a bounded set of
    # compiled kernel shapes; slice back to the exact T afterwards.
    T_kernel = _round_up(T, t_bucket) if t_bucket else T
    out = length_regulate(x, d_int, T_kernel, compute_dtype=compute_dtype,
                          out_dtype=out_dtype, max_time_tile=max_time_tile)
    if T_kernel != T:
        out = out[:, :T, :]
    # torch uses .long() (int64); JAX x64 is off by default so int32 here.
    mel_pos = jnp.arange(1, T + 1, dtype=jnp.int32)[None, :]      # (1, T)
    return out, mel_pos


def _reference_alignment(dt, T):
    """Direct port of LengthRegulator.create_alignment for checking."""
    N, L = dt.shape
    base = np.zeros((N, T, L), np.float32)
    for i in range(N):
        count = 0
        for j in range(L):
            for k in range(dt[i, j]):
                base[i, count + k, j] = 1.0
            count += dt[i, j]
    return base


if __name__ == "__main__":
    key = jax.random.PRNGKey(0)
    k1, k2, k3 = jax.random.split(key, 3)

    N, L, D = 2, 8, 32
    mel_max_len = 40

    x = jax.random.normal(k1, (N, L, D), dtype=jnp.float32)
    duration_target = jax.random.randint(k2, (N, L), 0, 5).astype(jnp.int32)

    # numpy reference (exact port of the PyTorch code path)
    dt_np = np.asarray(duration_target)
    expand_max_len = max(int(dt_np.sum(-1).max()), 1)
    align_ref = _reference_alignment(dt_np, expand_max_len)
    ref = align_ref @ np.asarray(x)
    ref_padded = np.pad(ref, ((0, 0), (0, mel_max_len - expand_max_len), (0, 0)))

    # --- training branch, exact f32 compute, default (single) time tile ---
    out_f32 = length_regulator_forward(x, alpha=1.0,
                                       duration_target=duration_target,
                                       duration=None,
                                       mel_max_len=mel_max_len,
                                       compute_dtype=jnp.float32)
    out_f32 = jax.block_until_ready(out_f32)
    assert out_f32.shape == (N, mel_max_len, D), out_f32.shape
    assert np.allclose(np.asarray(out_f32), ref_padded, atol=1e-5), \
        "f32 path mismatch vs reference"

    # --- training branch, default bf16 compute, forced small tile (16) so the
    #     multi-tile / ragged-last-tile / zero-gated-tile paths are exercised ---
    out_def = length_regulator_forward(x, alpha=1.0,
                                       duration_target=duration_target,
                                       duration=None,
                                       mel_max_len=mel_max_len,
                                       max_time_tile=16)
    out_def = jax.block_until_ready(out_def)
    assert out_def.shape == (N, mel_max_len, D), out_def.shape
    assert np.allclose(np.asarray(out_def), ref_padded, atol=5e-2), \
        "default (bf16 compute) path mismatch vs reference"

    # --- bf16 output dtype (halves HBM write traffic) ---
    out_bf16 = length_regulator_forward(x, alpha=1.0,
                                        duration_target=duration_target,
                                        duration=None,
                                        mel_max_len=mel_max_len,
                                        out_dtype=jnp.bfloat16,
                                        max_time_tile=16)
    out_bf16 = jax.block_until_ready(out_bf16)
    assert out_bf16.shape == (N, mel_max_len, D)
    assert out_bf16.dtype == jnp.bfloat16
    assert np.allclose(np.asarray(out_bf16, dtype=np.float32), ref_padded,
                       atol=5e-2), "bf16-output path mismatch vs reference"

    # --- inference branch (duration predictor output + alpha, bucketed T) ---
    duration = jax.random.uniform(k3, (N, L, 1), minval=0.0, maxval=4.0,
                                  dtype=jnp.float32)
    out2, mel_pos = length_regulator_forward(x, alpha=1.2,
                                             duration_target=None,
                                             duration=duration)
    out2 = jax.block_until_ready(out2)

    d_int = np.maximum((np.asarray(duration) * 1.2 + 0.5).astype(np.int32), 0)
    d_int = np.squeeze(d_int, -1)
    T2 = max(int(d_int.sum(-1).max()), 1)
    ref2 = _reference_alignment(d_int, T2) @ np.asarray(x)
    assert out2.shape == (N, T2, D), out2.shape
    assert np.allclose(np.asarray(out2), ref2, atol=5e-2), \
        "inference path mismatch vs reference"
    assert mel_pos.shape == (1, T2)
    assert int(mel_pos[0, 0]) == 1 and int(mel_pos[0, -1]) == T2

    print("KERNEL_OK")
</pallas_src>

<mosaic_0001>
module attributes {stable_mosaic.version = 11 : i64} {
  func.func @length_regulator_kernel(%arg0: i32, %arg1: i32, %arg2: memref<2xi32, #tpu.memory_space<smem>>, %arg3: memref<1x2x128xi32, #tpu.memory_space<vmem>>, %arg4: memref<1x128x32xf32, #tpu.memory_space<vmem>>, %arg5: memref<1x40x32xf32, #tpu.memory_space<vmem>>) attributes {dimension_semantics = [#tpu.dimension_semantics<parallel>, #tpu.dimension_semantics<parallel>], iteration_bounds = array<i64: 2, 1>, scalar_prefetch = 1 : i64, scratch_operands = 0 : i64, tpu.core_type = #tpu.core_type<tc>, window_params = [{transform_indices = @transform_0, window_bounds = array<i64: 1, 2, 128>}, {transform_indices = @transform_1, window_bounds = array<i64: 1, 128, 32>}, {transform_indices = @transform_2, window_bounds = array<i64: 1, 40, 32>}]} {
    %c40_i32 = arith.constant 40 : i32
    %0 = arith.muli %arg1, %c40_i32 : i32
    %1 = arith.index_cast %arg0 : i32 to index
    %2 = memref.load %arg2[%1] : memref<2xi32, #tpu.memory_space<smem>>
    %3 = arith.cmpi slt, %0, %2 : i32
    %4 = arith.extui %3 : i1 to i32
    %c0_i32 = arith.constant 0 : i32
    %5 = arith.cmpi ne, %4, %c0_i32 : i32
    scf.if %5 {
      %c0 = arith.constant 0 : index
      %c0_1 = arith.constant 0 : index
      %c0_2 = arith.constant 0 : index
      %9 = vector.load %arg3[%c0, %c0_1, %c0_2] : memref<1x2x128xi32, #tpu.memory_space<vmem>>, vector<1x1x128xi32>
      %10 = vector.shape_cast %9 : vector<1x1x128xi32> to vector<1x128xi32>
      %11 = vector.broadcast %0 : i32 to vector<1x128xi32>
      %12 = arith.subi %10, %11 : vector<1x128xi32>
      %c0_3 = arith.constant 0 : index
      %c1 = arith.constant 1 : index
      %c0_4 = arith.constant 0 : index
      %13 = vector.load %arg3[%c0_3, %c1, %c0_4] : memref<1x2x128xi32, #tpu.memory_space<vmem>>, vector<1x1x128xi32>
      %14 = vector.shape_cast %13 : vector<1x1x128xi32> to vector<1x128xi32>
      %15 = vector.broadcast %0 : i32 to vector<1x128xi32>
      %16 = arith.subi %14, %15 : vector<1x128xi32>
      %17 = tpu.iota {dimensions = array<i32: 0>} : vector<40x128xi32>
      %18 = vector.broadcast %12 : vector<1x128xi32> to vector<40x128xi32>
      %19 = arith.cmpi sge, %17, %18 : vector<40x128xi32>
      %20 = vector.broadcast %16 : vector<1x128xi32> to vector<40x128xi32>
      %21 = arith.cmpi slt, %17, %20 : vector<40x128xi32>
      %22 = arith.andi %19, %21 : vector<40x128xi1>
      %23 = arith.extui %22 : vector<40x128xi1> to vector<40x128xi32>
      %24 = arith.sitofp %23 : vector<40x128xi32> to vector<40x128xf32>
      %c0_5 = arith.constant 0 : index
      %c0_6 = arith.constant 0 : index
      %c0_7 = arith.constant 0 : index
      %25 = vector.load %arg4[%c0_5, %c0_6, %c0_7] : memref<1x128x32xf32, #tpu.memory_space<vmem>>, vector<1x128x32xf32>
      %26 = vector.shape_cast %25 : vector<1x128x32xf32> to vector<128x32xf32>
      %cst = arith.constant dense<0.000000e+00> : vector<40x32xf32>
      %27 = tpu.matmul %24, %26, %cst {dimension_numbers = #tpu.dot_dimension_numbers<[1], [0], [0], [1], [0, 0, 1, 1], [], []>} : vector<40x128xf32>, vector<128x32xf32>, vector<40x32xf32> -> vector<40x32xf32>
      %c0_8 = arith.constant 0 : index
      %c0_9 = arith.constant 0 : index
      %c0_10 = arith.constant 0 : index
      %28 = vector.load %arg5[%c0_8, %c0_9, %c0_10] : memref<1x40x32xf32, #tpu.memory_space<vmem>>, vector<1x40x32xf32>
      %29 = vector.shape_cast %28 : vector<1x40x32xf32> to vector<40x32xf32>
      %30 = vector.shape_cast %27 : vector<40x32xf32> to vector<1x40x32xf32>
      tpu.vector_store %arg5[%c0_8, %c0_9, %c0_10], %30 {strides = array<i32>} : memref<1x40x32xf32, #tpu.memory_space<vmem>>, vector<1x40x32xf32>,
    } else {
    }
    %true = arith.constant true
    %6 = arith.xori %3, %true : i1
    %7 = arith.extui %6 : i1 to i32
    %c0_i32_0 = arith.constant 0 : i32
    %8 = arith.cmpi ne, %7, %c0_i32_0 : i32
    scf.if %8 {
      %cst = arith.constant 0.000000e+00 : f32
      %9 = vector.broadcast %cst : f32 to vector<1x40x32xf32>
      %c0 = arith.constant 0 : index
      %c0_1 = arith.constant 0 : index
      %c0_2 = arith.constant 0 : index
      %10 = vector.load %arg5[%c0, %c0_1, %c0_2] : memref<1x40x32xf32, #tpu.memory_space<vmem>>, vector<1x40x32xf32>
      tpu.vector_store %arg5[%c0, %c0_1, %c0_2], %9 {strides = array<i32>} : memref<1x40x32xf32, #tpu.memory_space<vmem>>, vector<1x40x32xf32>,
    } else {
    }
    return
  }
  func.func @transform_0(%arg0: i32, %arg1: i32, %arg2: memref<2xi32, #tpu.memory_space<smem>>) -> (i32, i32, i32) {
    %c0_i32 = arith.constant 0 : i32
    %c0_i32_0 = arith.constant 0 : i32
    %c0_i32_1 = arith.constant 0 : i32
    return %arg0, %c0_i32, %c0_i32_0 : i32, i32, i32
  }
  func.func @transform_1(%arg0: i32, %arg1: i32, %arg2: memref<2xi32, #tpu.memory_space<smem>>) -> (i32, i32, i32) {
    %c0_i32 = arith.constant 0 : i32
    %c0_i32_0 = arith.constant 0 : i32
    %c0_i32_1 = arith.constant 0 : i32
    return %arg0, %c0_i32, %c0_i32_0 : i32, i32, i32
  }
  func.func @transform_2(%arg0: i32, %arg1: i32, %arg2: memref<2xi32, #tpu.memory_space<smem>>) -> (i32, i32, i32) {
    %c0_i32 = arith.constant 0 : i32
    %c0_i32_0 = arith.constant 0 : i32
    return %arg0, %arg1, %c0_i32 : i32, i32, i32
  }
}

</mosaic_0001>

<llo_original>
// kernel: tpu_custom_call.1
$region0: #{tpu_custom_call.1}
  #allocation0 [shape = 'u32[]', space=smem, size = 0x4, offset = 0x4, fixed_abs, tag = 'smem constant byte address 0x4 - core index']
  #allocation1 [shape = 'u32[72,128]{1,0:T(1,128)}', space=vmem, size = 0x9000, scoped, tag = 'internal scratch']
  #allocation2 [shape = 's32[1]{0}', space=sflag, size = 0x4, scoped, tag = 'scoped memory for tpu_custom_call.1']
  #allocation3 [shape = 'u8[512]{0}', space=smem, size = 0x200, scoped, tag = 'prefetched SMEM operand 0']
  %s0 = inlined_call_operand.vmem [shape: s32[2], index: 0, kind: input, shape index: {}]
  %s1 = inlined_call_operand.vmem [shape: s32[2,2,128], index: 1, kind: input, shape index: {}]
  %s2 = inlined_call_operand.vmem [shape: f32[2,128,32], index: 2, kind: input, shape index: {}]
  %s3 = inlined_call_operand.vmem [shape: f32[2,40,32], index: 3, kind: output, shape index: {}]
  %s4 = sld [smem:[#allocation0]]
  $region49: #{tpu_custom_call.1} parent=0
    _
  %s6 = ssub.s32 1, %s4
  %s7 = scalar_select 0, %s6, %s4
  %s9 = sshll.u32 %s0, 4
  %s10 = int_to_ptr.vmem [resolvable:$true] %s9
  %12 = dma.vmem_to_smem %s10, 16, [#allocation3], [#allocation2]
  %14 = dma.done [#allocation2], 16
  %15 = sfence
  loop: start=0, step=1, limit=4
  $region2: #{tpu_custom_call.1} parent=0 // loop_pre_header
    _
  $region3: #{tpu_custom_call.1} parent=0 // loop_header
    %s17 = sphi 0, %s21
    %p18 = scmp.ge.s32.totalorder %s17, 4
    %s24 = sphi 0, %s36
    %s25 = sphi 0, %s32
    %s26 = sphi 0, %s24
    %s27 = sphi 0, %s25
    %s28 = sphi 0, %s26
    %s29 = sphi 0, %s27
    %s39 = sphi 0, %s41
    %s42 = sphi 0, %s39
    %s43 = sphi 0, %s42
    %s59 = sphi 0, %s43
    %s65 = sphi 0, %s67
    %s68 = sphi 0, %s65
    %s69 = sphi 0, %s68
    %s85 = sphi 0, %s69
    %s93 = sphi 0, %s95
    %s96 = sphi 0, %s93
    %s97 = sphi 0, %s96
    %s113 = sphi 0, %s97
  $region4: #{tpu_custom_call.1} parent=0 // loop_header_branch
    %20 = sbr.rel (%p18) target = $region8
  $region5: #{tpu_custom_call.1} parent=0 // loop_body
    %s22 = ssub.s32 %s17, 1
    %s23 = ssub.s32 %s17, 2
    %s30 = sadd.s32 1, %s25
    %p31 = scmp.ge.s32.totalorder %s30, 1
    %s32 = scalar_select %p31, 0, %s30
    %s33 = sadd.s32 1, %s24
    %s34 = scalar_select %p31, %s33, %s24
    %p35 = scmp.ge.s32.totalorder %s34, 2
    %s36 = scalar_select %p35, 0, %s34
    %s37 = ssub.s32 %s24, %s36
    %p38 = scmp.eq.s32.totalorder %s37, 0
    %s40 = sadd.s32 %s39, 1
    %s41 = scalar_select %p38, %s39, %s40
    %p44 = pneg %p38
    %p45 = scmp.eq.s32.totalorder %s17, 1
    %p46 = por %p44, %p45
    %p47 = scmp.ne.s32.totalorder %s39, %s42
    %p48 = scmp.eq.s32.totalorder %s17, 0
    %p49 = por %p47, %p48
    %p50 = scmp.ne.s32.totalorder %s39, %s42
    %p51 = scmp.eq.s32.totalorder %s22, 1
    %p52 = por %p50, %p51
    %p53 = scmp.ne.s32.totalorder %s42, %s43
    %p54 = scmp.eq.s32.totalorder %s22, 0
    %p55 = por %p53, %p54
    %p56 = scmp.ne.s32.totalorder %s42, %s43
    %p57 = scmp.eq.s32.totalorder %s23, 1
    %p58 = por %p56, %p57
    %p60 = scmp.ne.s32.totalorder %s43, %s59
    %p61 = scmp.eq.s32.totalorder %s23, 0
    %p62 = por %p60, %p61
    %s63 = ssub.s32 %s24, %s36
    %p64 = scmp.eq.s32.totalorder %s63, 0
    %s66 = sadd.s32 %s65, 1
    %s67 = scalar_select %p64, %s65, %s66
    %p70 = pneg %p64
    %p71 = scmp.eq.s32.totalorder %s17, 1
    %p72 = por %p70, %p71
    %p73 = scmp.ne.s32.totalorder %s65, %s68
    %p74 = scmp.eq.s32.totalorder %s17, 0
    %p75 = por %p73, %p74
    %p76 = scmp.ne.s32.totalorder %s65, %s68
    %p77 = scmp.eq.s32.totalorder %s22, 1
    %p78 = por %p76, %p77
    %p79 = scmp.ne.s32.totalorder %s68, %s69
    %p80 = scmp.eq.s32.totalorder %s22, 0
    %p81 = por %p79, %p80
    %p82 = scmp.ne.s32.totalorder %s68, %s69
    %p83 = scmp.eq.s32.totalorder %s23, 1
    %p84 = por %p82, %p83
    %p86 = scmp.ne.s32.totalorder %s69, %s85
    %p87 = scmp.eq.s32.totalorder %s23, 0
    %p88 = por %p86, %p87
    %s89 = ssub.s32 %s24, %s36
    %s90 = ssub.s32 %s25, %s32
    %s91 = sor.u32 %s89, %s90
    %p92 = scmp.eq.s32.totalorder %s91, 0
    %s94 = sadd.s32 %s93, 1
    %s95 = scalar_select %p92, %s93, %s94
    %p98 = pneg %p92
    %p99 = scmp.eq.s32.totalorder %s17, 1
    %p100 = por %p98, %p99
    %p101 = scmp.ne.s32.totalorder %s93, %s96
    %p102 = scmp.eq.s32.totalorder %s17, 0
    %p103 = por %p101, %p102
    %p104 = scmp.ne.s32.totalorder %s93, %s96
    %p105 = scmp.eq.s32.totalorder %s22, 1
    %p106 = por %p104, %p105
    %p107 = scmp.ne.s32.totalorder %s96, %s97
    %p108 = scmp.eq.s32.totalorder %s22, 0
    %p109 = por %p107, %p108
    %p110 = scmp.ne.s32.totalorder %s96, %s97
    %p111 = scmp.eq.s32.totalorder %s23, 1
    %p112 = por %p110, %p111
    %p114 = scmp.ne.s32.totalorder %s97, %s113
    %p115 = scmp.eq.s32.totalorder %s23, 0
    %p116 = por %p114, %p115
    %p117 = scmp.le.s32.totalorder 1, %s17
    %p118 = scmp.lt.s32.totalorder %s17, 3
    %p119 = pnand %p117, %p118
    %p120 = pneg %p119
    // Predicated region
    $region9: #{tpu_custom_call.1} parent=5 // pred_check
      _
    $region10: #{tpu_custom_call.1} parent=5 // pred_check_branch
      %122 = sbr.rel (%p119) target = $region12
    $region11: #{tpu_custom_call.1} parent=5 // pred_region
      %s123 = ssub.s32 %s17, 1
    $region12: #{tpu_custom_call.1} parent=5 // pred_fallthru
      _
    %p124 = scmp.lt.s32.totalorder %s17, 2
    // Predicated region
    $region13: #{tpu_custom_call.1} parent=5 // pred_check
      %p125 = pneg %p124
    $region14: #{tpu_custom_call.1} parent=5 // pred_check_branch
      %127 = sbr.rel (%p125) target = $region16
    $region15: #{tpu_custom_call.1} parent=5 // pred_region
      // Predicated region
      $region17: #{tpu_custom_call.1} parent=15 // pred_check
        %p128 = pneg %p49
      $region18: #{tpu_custom_call.1} parent=15 // pred_check_branch
        %130 = sbr.rel (%p128) target = $region20
      $region19: #{tpu_custom_call.1} parent=15 // pred_region
        %p131 = scmp.lt.s32.totalorder %s24, 1
        %s132 = scalar_select %p131, %s24, 1
        %s133 = smul.addr %s132, 2
        %s134 = scalar_lea.vmem %s1, %s133
      $region20: #{tpu_custom_call.1} parent=15 // pred_fallthru
        _
      // Predicated region
      $region21: #{tpu_custom_call.1} parent=15 // pred_check
        %p135 = pneg %p75
      $region22: #{tpu_custom_call.1} parent=15 // pred_check_branch
        %137 = sbr.rel (%p135) target = $region24
      $region23: #{tpu_custom_call.1} parent=15 // pred_region
        %p138 = scmp.lt.s32.totalorder %s24, 1
        %s139 = scalar_select %p138, %s24, 1
        %s140 = smul.addr %s139, 16
        %s141 = smul.addr %s140, 8
        %s142 = scalar_lea.vmem %s2, %s141
      $region24: #{tpu_custom_call.1} parent=15 // pred_fallthru
        _
    $region16: #{tpu_custom_call.1} parent=5 // pred_fallthru
      _
    %p143 = scmp.le.s32.totalorder 1, %s17
    %p144 = scmp.lt.s32.totalorder %s17, 3
    %p145 = pnand %p143, %p144
    %p146 = pneg %p145
    // Predicated region
    $region25: #{tpu_custom_call.1} parent=5 // pred_check
      _
    $region26: #{tpu_custom_call.1} parent=5 // pred_check_branch
      %148 = sbr.rel (%p145) target = $region28
    $region27: #{tpu_custom_call.1} parent=5 // pred_region
      %s149 = ssub.s32 %s17, 1
      %p150 = scmp.lt.s32.totalorder %s26, 1
      %s151 = scalar_select %p150, %s26, 1
      %s152 = smul.addr %s151, 2
      %s153 = scalar_lea.vmem %s1, %s152
      %p154 = pneg %p55
      %p155 = pneg %p52
      %p156 = scmp.lt.s32.totalorder %s26, 1
      %s157 = scalar_select %p156, %s26, 1
      %s158 = smul.addr %s157, 16
      %s159 = smul.addr %s158, 8
      %s160 = scalar_lea.vmem %s2, %s159
      %p161 = pneg %p81
      %p162 = pneg %p78
      %p163 = pneg %p109
      %p164 = pneg %p106
      %s165 = smul.u32 5, %s27
      %p166 = scmp.lt.s32.totalorder %s26, 1
      %s167 = scalar_select %p166, %s26, 1
      %p168 = scmp.lt.s32.totalorder %s165, 4
      %s169 = scalar_select %p168, %s165, 4
      %s170 = smul.addr %s167, 5
      %s171 = sadd.s32 %s169, %s170
      %s172 = smul.addr %s171, 8
      %s173 = scalar_lea.vmem %s3, %s172
      %p174 = scmp.lt.s32.totalorder %s26, 1
      %s175 = scalar_select %p174, %s26, 1
      %s176 = smul.addr %s175, 2
      %s177 = scalar_lea.vmem %s1, %s176
      %p178 = scmp.lt.s32.totalorder %s26, 1
      %s179 = scalar_select %p178, %s26, 1
      %s180 = smul.addr %s179, 16
      %s181 = smul.addr %s180, 8
      %s182 = scalar_lea.vmem %s2, %s181
      %s183 = smul.u32 5, %s27
      %p184 = scmp.lt.s32.totalorder %s26, 1
      %s185 = scalar_select %p184, %s26, 1
      %p186 = scmp.lt.s32.totalorder %s183, 4
      %s187 = scalar_select %p186, %s183, 4
      %s188 = smul.addr %s185, 5
      %s189 = sadd.s32 %s187, %s188
      %s190 = smul.addr %s189, 8
      %s191 = scalar_lea.vmem %s3, %s190
      %s192 = smul.u32 5, %s27
      %s193 = smul.u32 %s27, 40
      %s194 = sld [smem:[#allocation3 + %s26]]
      %p195 = scmp.lt.s32.totalorder %s193, %s194
      // Predicated region
      $region29: #{tpu_custom_call.1} parent=27 // pred_check
        %p196 = pneg %p195
      $region30: #{tpu_custom_call.1} parent=27 // pred_check_branch
        %198 = sbr.rel (%p196) target = $region32
      $region31: #{tpu_custom_call.1} parent=27 // pred_region
        %v199 = vld [vmem:[%s177] sm:$0x1]
        %v200 = vstv %s193
        %v201 = vsub.s32 %v199, %v200
        %v202 = vld [vmem:[%s177 + $0x1] sm:$0x1]
        %v203 = vsub.s32 %v202, %v200
        %v204 = vlaneseq
        %v205 = vshrl.u32 %v204, 7
        %v206 = vadd.s32 %v205, 8
        %v207 = vadd.s32 %v205, 16
        %v208 = vadd.s32 %v205, 24
        %v209 = vadd.s32 %v205, 32
        %v210 = vperm.slane %v201, 0
        %vm211 = vcmp.ge.s32.totalorder %v205, %v210
        %vm212 = vcmp.ge.s32.totalorder %v206, %v210
        %vm213 = vcmp.ge.s32.totalorder %v207, %v210
        %vm214 = vcmp.ge.s32.totalorder %v208, %v210
        %vm215 = vcmp.ge.s32.totalorder %v209, %v210
        %v216 = vperm.slane %v203, 0
        %vm217 = vcmp.lt.s32.totalorder %v205, %v216
        %vm218 = vcmp.lt.s32.totalorder %v206, %v216
        %vm219 = vcmp.lt.s32.totalorder %v207, %v216
        %vm220 = vcmp.lt.s32.totalorder %v208, %v216
        %vm221 = vcmp.lt.s32.totalorder %v209, %v216
        %vm222 = vmand %vm211, %vm217
        %vm223 = vmand %vm212, %vm218
        %vm224 = vmand %vm213, %vm219
        %vm225 = vmand %vm214, %vm220
        %vm226 = vmand %vm215, %vm221
        %v227 = vsel %vm222, 1, 0
        %v228 = vsel %vm223, 1, 0
        %v229 = vsel %vm224, 1, 0
        %v230 = vsel %vm225, 1, 0
        %v231 = vsel %vm226, 1, 0
        %v232 = vcvt.s32.f32 %v227
        %v233 = vcvt.s32.f32 %v228
        %v234 = vcvt.s32.f32 %v229
        %v235 = vcvt.s32.f32 %v230
        %v236 = vcvt.s32.f32 %v231
        %v237 = vld [vmem:[%s182] sm:$0xff]
        %v238 = vld [vmem:[%s182 + $0x8] sm:$0xff]
        %v239 = vld [vmem:[%s182 + $0x10] sm:$0xff]
        %v240 = vld [vmem:[%s182 + $0x18] sm:$0xff]
        %v241 = vld [vmem:[%s182 + $0x20] sm:$0xff]
        %v242 = vld [vmem:[%s182 + $0x28] sm:$0xff]
        %v243 = vld [vmem:[%s182 + $0x30] sm:$0xff]
        %v244 = vld [vmem:[%s182 + $0x38] sm:$0xff]
        %v245 = vld [vmem:[%s182 + $0x40] sm:$0xff]
        %v246 = vld [vmem:[%s182 + $0x48] sm:$0xff]
        %v247 = vld [vmem:[%s182 + $0x50] sm:$0xff]
        %v248 = vld [vmem:[%s182 + $0x58] sm:$0xff]
        %v249 = vld [vmem:[%s182 + $0x60] sm:$0xff]
        %v250 = vld [vmem:[%s182 + $0x68] sm:$0xff]
        %v251 = vld [vmem:[%s182 + $0x70] sm:$0xff]
        %v252 = vld [vmem:[%s182 + $0x78] sm:$0xff]
        %253 = vmatpush.msra.mxu0 %v252
        %254 = vmatpush.msra.mxu0 %v251
        %255 = vmatpush.msra.mxu0 %v250
        %256 = vmatpush.msra.mxu0 %v249
        %257 = vmatpush.msra.mxu0 %v248
        %258 = vmatpush.msra.mxu0 %v247
        %259 = vmatpush.msra.mxu0 %v246
        %260 = vmatpush.msra.mxu0 %v245
        %261 = vmatpush.msra.mxu0 %v244
        %262 = vmatpush.msra.mxu0 %v243
        %263 = vmatpush.msra.mxu0 %v242
        %264 = vmatpush.msra.mxu0 %v241
        %265 = vmatpush.msra.mxu0 %v240
        %266 = vmatpush.msra.mxu0 %v239
        %267 = vmatpush.msra.mxu0 %v238
        %268 = vmatpush.msra.mxu0 %v237
        %269 = vmatmul.f32.gmra.mxu0 %v232
        %v270 = vpop.f32.mrf.mxu0
        %v271 = vadd.f32 0.0, %v270
        %272 = vmatmul.f32.gmra.mxu0 %v233
        %v273 = vpop.f32.mrf.mxu0
        %v274 = vadd.f32 0.0, %v273
        %275 = vmatmul.f32.gmra.mxu0 %v234
        %v276 = vpop.f32.mrf.mxu0
        %v277 = vadd.f32 0.0, %v276
        %278 = vmatmul.f32.gmra.mxu0 %v235
        %v279 = vpop.f32.mrf.mxu0
        %v280 = vadd.f32 0.0, %v279
        %281 = vmatmul.f32.gmra.mxu0 %v236
        %v282 = vpop.f32.mrf.mxu0
        %v283 = vadd.f32 0.0, %v282
        %284 = vdwg.mxu0
        %vm285 = vcmask 261120
        %286 = vst.msk [vmem:[%s191] sm:$0xff] %vm285, %v271
        %287 = vst.msk [vmem:[%s191 + $0x8] sm:$0xff] %vm285, %v274
        %288 = vst.msk [vmem:[%s191 + $0x10] sm:$0xff] %vm285, %v277
        %289 = vst.msk [vmem:[%s191 + $0x18] sm:$0xff] %vm285, %v280
        %290 = vst.msk [vmem:[%s191 + $0x20] sm:$0xff] %vm285, %v283
      $region32: #{tpu_custom_call.1} parent=27 // pred_fallthru
        _
      %p291 = scmp.ge.s32.totalorder %s193, %s194
      // Predicated region
      $region33: #{tpu_custom_call.1} parent=27 // pred_check
        %p292 = pneg %p291
      $region34: #{tpu_custom_call.1} parent=27 // pred_check_branch
        %294 = sbr.rel (%p292) target = $region36
      $region35: #{tpu_custom_call.1} parent=27 // pred_region
        %vm295 = vcmask 261120
        %296 = vst.msk [vmem:[%s191] sm:$0xff] %vm295, 0.0
        %297 = vst.msk [vmem:[%s191 + $0x8] sm:$0xff] %vm295, 0.0
        %298 = vst.msk [vmem:[%s191 + $0x10] sm:$0xff] %vm295, 0.0
        %299 = vst.msk [vmem:[%s191 + $0x18] sm:$0xff] %vm295, 0.0
        %300 = vst.msk [vmem:[%s191 + $0x20] sm:$0xff] %vm295, 0.0
      $region36: #{tpu_custom_call.1} parent=27 // pred_fallthru
        _
      %s301 = smul.u32 5, %s27
      %p302 = scmp.lt.s32.totalorder %s26, 1
      %s303 = scalar_select %p302, %s26, 1
      %p304 = scmp.lt.s32.totalorder %s301, 4
      %s305 = scalar_select %p304, %s301, 4
      %s306 = smul.addr %s303, 5
      %s307 = sadd.s32 %s305, %s306
      %s308 = smul.addr %s307, 8
      %s309 = scalar_lea.vmem %s3, %s308
      // Predicated region
      $region37: #{tpu_custom_call.1} parent=27 // pred_check
        %p310 = pneg %p106
      $region38: #{tpu_custom_call.1} parent=27 // pred_check_branch
        %312 = sbr.rel (%p310) target = $region40
      $region39: #{tpu_custom_call.1} parent=27 // pred_region
        %s313 = smul.u32 5, %s27
      $region40: #{tpu_custom_call.1} parent=27 // pred_fallthru
        _
    $region28: #{tpu_custom_call.1} parent=5 // pred_fallthru
      _
    %p314 = scmp.le.s32.totalorder 2, %s17
    // Predicated region
    $region41: #{tpu_custom_call.1} parent=5 // pred_check
      %p315 = pneg %p314
    $region42: #{tpu_custom_call.1} parent=5 // pred_check_branch
      %317 = sbr.rel (%p315) target = $region44
    $region43: #{tpu_custom_call.1} parent=5 // pred_region
      %s318 = ssub.s32 %s17, 2
      // Predicated region
      $region45: #{tpu_custom_call.1} parent=43 // pred_check
        %p319 = pneg %p112
      $region46: #{tpu_custom_call.1} parent=43 // pred_check_branch
        %321 = sbr.rel (%p319) target = $region48
      $region47: #{tpu_custom_call.1} parent=43 // pred_region
        %s322 = smul.u32 5, %s29
        %p323 = scmp.lt.s32.totalorder %s28, 1
        %s324 = scalar_select %p323, %s28, 1
        %p325 = scmp.lt.s32.totalorder %s322, 4
        %s326 = scalar_select %p325, %s322, 4
        %s327 = smul.addr %s324, 5
        %s328 = sadd.s32 %s326, %s327
        %s329 = smul.addr %s328, 8
        %s330 = scalar_lea.vmem %s3, %s329
      $region48: #{tpu_custom_call.1} parent=43 // pred_fallthru
        _
    $region44: #{tpu_custom_call.1} parent=5 // pred_fallthru
      _
  $region6: #{tpu_custom_call.1} parent=0 // loop_footer
    %s21 = sadd.s32 1, %s17
  $region7: #{tpu_custom_call.1} parent=0 // loop_footer_branch
    %16 = sbr.rel target = $region3
  $region8: #{tpu_custom_call.1} parent=0 // loop_exit
    _

</llo_original>
